<compile_context>
chip_gen: v5e
topology: v5e:2x2
jax: 0.10.0
libtpu: 0.0.40
codegen_flags: <defaults>
</compile_context>

<pallas_src>
import jax
import jax.numpy as jnp
from jax.experimental import pallas as pl
from jax.experimental.pallas import tpu as pltpu


LANE = 1024                    # 8 sublanes * 128 lanes of f32 -> one full vreg row
_DEFAULT_TILE_ROWS = 1024      # 1024 x 1024 f32 = 4 MiB / buffer (safe on v7x)
_BIG_VMEM_TILE_ROWS = 2048     # only on chips with 128 MiB physical VMEM (v5e/v6e)


def _single_mult_kernel(factor_ref, x_ref, o_ref):
    # factor_ref: (1, 1) float32 scalar in SMEM.
    # x_ref / o_ref: current tile in VMEM (2-D or 1-D; body is shape-agnostic).
    s = factor_ref[0, 0].astype(o_ref.dtype)            # hoisted scalar read + cast
    o_ref[...] = x_ref[...].astype(o_ref.dtype) * s


def _select_tiling():
    """(max tile rows, vmem_limit_bytes), tuned per TPU generation with a safe fallback."""
    max_rows, vmem_limit = _DEFAULT_TILE_ROWS, 32 * 1024 * 1024
    try:
        info_fn = getattr(pltpu, "get_tpu_info", None)
        if info_fn is not None:
            vmem_bytes = int(info_fn().vmem_capacity_bytes)
            if vmem_bytes >= 96 * 1024 * 1024:
                # v5e / v6e: 128 MiB physical VMEM -> 8 MiB buffers, fewer grid
                # steps (amortizes the ~0.35 us/step pipeline overhead).
                max_rows, vmem_limit = _BIG_VMEM_TILE_ROWS, 64 * 1024 * 1024
    except Exception:
        pass  # unknown chip / API -> keep the everywhere-safe default
    return max_rows, vmem_limit


def _dimension_semantics(num_blocks):
    """Grid-axis semantics: CORE_PARALLEL on multi-TC chips (v7x), else 'parallel'."""
    sem = "parallel"
    try:
        core_parallel = getattr(pltpu, "CORE_PARALLEL", None)
        kind = jax.devices()[0].device_kind.lower()
        # Only v7x in the supported set has 2 TensorCores per chip.
        if core_parallel is not None and num_blocks >= 2 and "7" in kind:
            # TODO(synk): verify with an xprof trace that both TCs issue DMAs.
            sem = core_parallel
    except Exception:
        pass
    return (sem,)


def single_mult(x: jax.Array, factor: jax.Array) -> jax.Array:
    """Pallas equivalent of SingleMult.forward: out = x * factor."""
    orig_shape = x.shape
    total = x.size

    # Output dtype: floating inputs keep their dtype (bf16 stays bf16 and is
    # multiplied natively); ints/bools are promoted like PyTorch's
    # `int_tensor * float_parameter`.
    if jnp.issubdtype(x.dtype, jnp.floating):
        out_dtype = x.dtype
    else:
        out_dtype = jnp.promote_types(x.dtype, jnp.float32)

    if total == 0:
        return jnp.zeros(orig_shape, out_dtype)

    # The parameter mirrors the float32 nn.Parameter; it lives in SMEM.
    factor_smem = jnp.asarray(factor, dtype=jnp.float32).reshape(1, 1)

    max_rows, vmem_limit = _select_tiling()

    if total % LANE == 0:
        # Lane-dense 2-D slab: every (8, 128) vreg fully occupied, unmasked
        # vld/vst for all full row-blocks; only a ragged last row-block (if
        # rows % tile_rows != 0) gets masked writes.  Reshape is free.
        rows = total // LANE
        tile_rows = min(max_rows, rows)          # full-dim block allowed if rows < 8
        grid = (pl.cdiv(rows, tile_rows),)
        x_view = x.reshape(rows, LANE)
        out_shape = jax.ShapeDtypeStruct((rows, LANE), out_dtype)
        block = (tile_rows, LANE)
        index_map = lambda i: (i, 0)
    else:
        # Ragged element count: pass the flat tensor un-padded (no jnp.pad, no
        # tail slice).  Full blocks are a multiple of 8*128 elements; Pallas
        # masks the partial last block so out-of-range lanes are never written.
        tile_elems = min(max_rows * LANE, total)
        grid = (pl.cdiv(total, tile_elems),)
        x_view = x.reshape(total)
        out_shape = jax.ShapeDtypeStruct((total,), out_dtype)
        block = (tile_elems,)
        index_map = lambda i: (i,)

    out = pl.pallas_call(
        _single_mult_kernel,
        out_shape=out_shape,
        grid=grid,
        in_specs=[
            pl.BlockSpec(memory_space=pltpu.SMEM),   # untiled (1,1) f32 factor
            pl.BlockSpec(block, index_map),          # streamed input tiles
        ],
        out_specs=pl.BlockSpec(block, index_map),
        compiler_params=pltpu.CompilerParams(
            dimension_semantics=_dimension_semantics(grid[0]),
            vmem_limit_bytes=vmem_limit,
        ),
    )(factor_smem, x_view)

    return out.reshape(orig_shape)


if __name__ == "__main__":
    # Mirrors: self.factor = nn.Parameter(factor_init * torch.tensor(factor_init))
    factor_init = 1.0
    factor = jnp.asarray(factor_init * factor_init, dtype=jnp.float32)

    key, key2 = jax.random.split(jax.random.PRNGKey(0))

    # Main test: NCHW input, element count a multiple of 1024 (2-D fast path).
    x = jax.random.normal(key, (2, 4, 16, 16), dtype=jnp.float32)
    out = single_mult(x, factor)
    jax.block_until_ready(out)
    expected = x * factor
    assert out.shape == x.shape and out.dtype == x.dtype
    assert jnp.allclose(out, expected, atol=1e-6, rtol=1e-6)

    # Ragged test: 210 elements (not a multiple of 1024) exercises the
    # un-padded 1-D path with a non-trivial factor (factor_init=0.5 -> 0.25).
    factor2 = jnp.asarray(0.5 * 0.5, dtype=jnp.float32)
    x2 = jax.random.normal(key2, (2, 3, 5, 7), dtype=jnp.float32)
    out2 = single_mult(x2, factor2)
    jax.block_until_ready(out2)
    assert out2.shape == x2.shape and out2.dtype == x2.dtype
    assert jnp.allclose(out2, x2 * factor2, atol=1e-6, rtol=1e-6)

    print("KERNEL_OK")
</pallas_src>

<mosaic_0001>
module attributes {stable_mosaic.version = 11 : i64} {
  func.func @_single_mult_kernel(%arg0: i32, %arg1: memref<1x1xf32, #tpu.memory_space<smem>>, %arg2: memref<2x1024xf32, #tpu.memory_space<vmem>>, %arg3: memref<2x1024xf32, #tpu.memory_space<vmem>>) attributes {dimension_semantics = [#tpu.dimension_semantics<parallel>], iteration_bounds = array<i64: 1>, scalar_prefetch = 0 : i64, scratch_operands = 0 : i64, tpu.core_type = #tpu.core_type<tc>, window_params = [{transform_indices = @transform_0, window_bounds = array<i64: 1, 1>}, {transform_indices = @transform_1, window_bounds = array<i64: 2, 1024>}, {transform_indices = @transform_2, window_bounds = array<i64: 2, 1024>}]} {
    %c0 = arith.constant 0 : index
    %c0_0 = arith.constant 0 : index
    %0 = memref.load %arg1[%c0, %c0_0] : memref<1x1xf32, #tpu.memory_space<smem>>
    %c0_1 = arith.constant 0 : index
    %c0_2 = arith.constant 0 : index
    %1 = vector.load %arg2[%c0_1, %c0_2] : memref<2x1024xf32, #tpu.memory_space<vmem>>, vector<2x1024xf32>
    %2 = vector.broadcast %0 : f32 to vector<2x1024xf32>
    %3 = arith.mulf %1, %2 : vector<2x1024xf32>
    %c0_3 = arith.constant 0 : index
    %c0_4 = arith.constant 0 : index
    %4 = vector.load %arg3[%c0_3, %c0_4] : memref<2x1024xf32, #tpu.memory_space<vmem>>, vector<2x1024xf32>
    tpu.vector_store %arg3[%c0_3, %c0_4], %3 {strides = array<i32>} : memref<2x1024xf32, #tpu.memory_space<vmem>>, vector<2x1024xf32>,
    return
  }
  func.func @transform_0(%arg0: i32) -> (i32, i32) {
    %c0_i32 = arith.constant 0 : i32
    %c0_i32_0 = arith.constant 0 : i32
    %c0_i32_1 = arith.constant 0 : i32
    return %c0_i32, %c0_i32_0 : i32, i32
  }
  func.func @transform_1(%arg0: i32) -> (i32, i32) {
    %c0_i32 = arith.constant 0 : i32
    %c0_i32_0 = arith.constant 0 : i32
    return %arg0, %c0_i32 : i32, i32
  }
  func.func @transform_2(%arg0: i32) -> (i32, i32) {
    %c0_i32 = arith.constant 0 : i32
    %c0_i32_0 = arith.constant 0 : i32
    return %arg0, %c0_i32 : i32, i32
  }
}

</mosaic_0001>

<llo_original>
// kernel: tpu_custom_call.1
$region0: #{tpu_custom_call.1}
  #allocation0 [shape = 'u32[]', space=smem, size = 0x4, offset = 0x4, fixed_abs, tag = 'smem constant byte address 0x4 - core index']
  #allocation1 [shape = 'u32[72,128]{1,0:T(1,128)}', space=vmem, size = 0x9000, scoped, tag = 'internal scratch']
  #allocation2 [shape = 'f32[1,1]{1,0:T(1,128)S(6)}', space=smem, size = 0x200, scoped, tag = 'scoped memory for tpu_custom_call.1']
  %s0 = inlined_call_operand.<no memory space> [shape: f32[1,1], index: 0, kind: input, shape index: {}]
  %s1 = inlined_call_operand.hbm [shape: f32[2,1024], index: 1, kind: input, shape index: {}]
  %s2 = inlined_call_operand.hbm [shape: f32[2,1024], index: 2, kind: output, shape index: {}]
  %s3 = sld [smem:[#allocation0]]
  $region22: #{tpu_custom_call.1} parent=0
    _
  %s5 = ssub.s32 1, %s3
  %s6 = scalar_select 0, %s5, %s3
  %7 = sst [smem:[#allocation2]] %s0
  $region1: #{tpu_custom_call.1} parent=0
    #allocation3 [shape = 'u8[8192]{0}', space=vmem, size = 0x2000, scoped, tag = 'input window, operand 1, single buffered']
    #allocation4 [shape = 's32[1]{0}', space=sflag, size = 0x4, scoped, tag = 'scoped memory for tpu_custom_call.1']
    #allocation5 [shape = 's32[1]{0}', space=sflag, size = 0x4, scoped, tag = 'scoped memory for tpu_custom_call.1']
    #allocation6 [shape = 'u8[8192]{0}', space=vmem, size = 0x2000, scoped, tag = 'output window, operand 0, single buffered']
    %8 = vsyncpa [#allocation4], 0
    %9 = vsyncpa [#allocation5], 0
    // Predicated region
    $region2: #{tpu_custom_call.1} parent=1 // pred_check
      _
    $region3: #{tpu_custom_call.1} parent=1 // pred_check_branch
      %11 = sbr.rel (0) target = $region5
    $region4: #{tpu_custom_call.1} parent=1 // pred_region
      _
    $region5: #{tpu_custom_call.1} parent=1 // pred_fallthru
      _
    // Predicated region
    $region6: #{tpu_custom_call.1} parent=1 // pred_check
      _
    $region7: #{tpu_custom_call.1} parent=1 // pred_check_branch
      %13 = sbr.rel (0) target = $region9
    $region8: #{tpu_custom_call.1} parent=1 // pred_region
      %15 = vsyncadd [#allocation4], 0
      %s17 = sshll.u32 %s1, 4
      %s18 = int_to_ptr.hbm [resolvable:$true] %s17
      %s19 = sshll.u32 [#allocation3], 4
      %s20 = int_to_ptr.vmem [resolvable:$true] %s19
      %22 = dma.hbm_to_vmem [thread:$0]  %s18, 256, %s20, [#allocation4]
    $region9: #{tpu_custom_call.1} parent=1 // pred_fallthru
      _
    // Predicated region
    $region10: #{tpu_custom_call.1} parent=1 // pred_check
      _
    $region11: #{tpu_custom_call.1} parent=1 // pred_check_branch
      %24 = sbr.rel (0) target = $region13
    $region12: #{tpu_custom_call.1} parent=1 // pred_region
      %26 = dma.done [#allocation4], 256
    $region13: #{tpu_custom_call.1} parent=1 // pred_fallthru
      _
    %s27 = sld [smem:[#allocation2]]
    %v28 = vld [vmem:[#allocation3] sm:$0xff]
    %v29 = vld [vmem:[#allocation3 + $0x8] sm:$0xff]
    %v30 = vstv %s27
    %v31 = vmul.f32 %v28, %v30
    %v32 = vmul.f32 %v29, %v30
    %33 = vst [vmem:[#allocation6] sm:$0xff] %v31
    %34 = vst [vmem:[#allocation6 + $0x8] sm:$0xff] %v32
    // Predicated region
    $region14: #{tpu_custom_call.1} parent=1 // pred_check
      _
    $region15: #{tpu_custom_call.1} parent=1 // pred_check_branch
      %36 = sbr.rel (0) target = $region17
    $region16: #{tpu_custom_call.1} parent=1 // pred_region
      %38 = vsyncadd [#allocation5], 0
      %s40 = sshll.u32 [#allocation6], 4
      %s41 = int_to_ptr.vmem [resolvable:$true] %s40
      %s42 = sshll.u32 %s2, 4
      %s43 = int_to_ptr.hbm [resolvable:$true] %s42
      %45 = dma.vmem_to_hbm [thread:$0]  %s41, 256, %s43, [#allocation5]
    $region17: #{tpu_custom_call.1} parent=1 // pred_fallthru
      _
    // Predicated region
    $region18: #{tpu_custom_call.1} parent=1 // pred_check
      _
    $region19: #{tpu_custom_call.1} parent=1 // pred_check_branch
      %47 = sbr.rel (0) target = $region21
    $region20: #{tpu_custom_call.1} parent=1 // pred_region
      %49 = dma.done [#allocation5], 256
    $region21: #{tpu_custom_call.1} parent=1 // pred_fallthru
      _
    %50 = vsyncpa [#allocation4], 1
    %51 = vsyncpa [#allocation5], 1

</llo_original>
